<compile_context>
chip_gen: v7x
topology: tpu7x:2x2x1
jax: 0.10.0
libtpu: 0.0.40
codegen_flags: <defaults>
</compile_context>

<pallas_src>
import sys

import numpy as np
import jax
import jax.numpy as jnp
from jax.experimental import pallas as pl
from jax.experimental.pallas import tpu as pltpu


def _round_up(x, k):
    return ((x + k - 1) // k) * k


# ---------------------------------------------------------------------------
# Pallas kernel 1: tiled pairwise L-infinity distance block.
# ---------------------------------------------------------------------------
def _pairwise_linf_kernel(a_ref, bt_ref, d_ref):
    a = a_ref[...]                        # (tm, 2): col 0 = birth, col 1 = death
    bt = bt_ref[...]                      # (2, tn): row 0 = birth, row 1 = death
    ab = a[:, 0:1]                        # (tm, 1)
    ad = a[:, 1:2]                        # (tm, 1)
    bb = bt[0:1, :]                       # (1, tn)  already lane-dense, no .T
    bd = bt[1:2, :]                       # (1, tn)
    d_ref[...] = jnp.maximum(jnp.abs(ab - bb), jnp.abs(ad - bd))


# ---------------------------------------------------------------------------
# Pallas kernel 2 (tiny, ungridded): distance of each point to the diagonal.
# ---------------------------------------------------------------------------
def _pers_kernel(a_ref, bt_ref, pa_ref, pb_ref):
    a = a_ref[...]                        # (n_pad, 2)
    bt = bt_ref[...]                      # (2, m_pad)
    pa_ref[...] = (a[:, 1:2] - a[:, 0:1]) * 0.5      # (n_pad, 1)
    pb_ref[...] = (bt[1:2, :] - bt[0:1, :]) * 0.5    # (1, m_pad)


# ---------------------------------------------------------------------------
# Wrapper: run the kernels, return (d, pa, pb) plus the logical sizes.
# ---------------------------------------------------------------------------
def bottleneck_parts(dgm0, dgm1, *, tm=256, tn=512):
    dgm0 = jnp.asarray(dgm0, jnp.float32)
    dgm1 = jnp.asarray(dgm1, jnp.float32)
    n, m = int(dgm0.shape[0]), int(dgm1.shape[0])

    # Pad rows to a multiple of 8 (sublanes) and columns to a multiple of 128
    # (lanes); then round up so the tile sizes divide evenly.
    n_pad = _round_up(max(n, 1), 8)
    m_pad = _round_up(max(m, 1), 128)
    tm = min(tm, n_pad)                   # multiple of 8 by construction
    tn = min(tn, m_pad)                   # multiple of 128 by construction
    n_pad = _round_up(n_pad, tm)
    m_pad = _round_up(m_pad, tn)

    # dgm0 in natural (rows, 2) layout; dgm1 transposed lane-dense (2, cols).
    a2 = jnp.zeros((n_pad, 2), jnp.float32).at[:n, :].set(dgm0)
    b2t = jnp.zeros((2, m_pad), jnp.float32).at[:, :m].set(dgm1.T)

    grid = (n_pad // tm, m_pad // tn)
    d = pl.pallas_call(
        _pairwise_linf_kernel,
        out_shape=jax.ShapeDtypeStruct((n_pad, m_pad), jnp.float32),
        grid=grid,
        in_specs=[
            pl.BlockSpec((tm, 2), lambda i, j: (i, 0)),
            pl.BlockSpec((2, tn), lambda i, j: (0, j)),
        ],
        out_specs=pl.BlockSpec((tm, tn), lambda i, j: (i, j)),
        compiler_params=pltpu.CompilerParams(
            dimension_semantics=("parallel", "parallel")),
    )(a2, b2t)

    pa, pb = pl.pallas_call(
        _pers_kernel,
        out_shape=(
            jax.ShapeDtypeStruct((n_pad, 1), jnp.float32),
            jax.ShapeDtypeStruct((1, m_pad), jnp.float32),
        ),
        in_specs=[
            pl.BlockSpec(memory_space=pltpu.MemorySpace.VMEM),
            pl.BlockSpec(memory_space=pltpu.MemorySpace.VMEM),
        ],
        out_specs=(
            pl.BlockSpec(memory_space=pltpu.MemorySpace.VMEM),
            pl.BlockSpec(memory_space=pltpu.MemorySpace.VMEM),
        ),
    )(a2, b2t)

    return d, pa, pb, n, m


# ---------------------------------------------------------------------------
# Host-side exact bottleneck (binary search over candidate thresholds plus a
# Kuhn perfect-matching feasibility check), working on the kernel outputs.
# ---------------------------------------------------------------------------
def _feasible(cost, t):
    N = cost.shape[0]
    adj = cost <= t
    match_r = -np.ones(N, dtype=np.int64)

    def try_kuhn(u, visited):
        for v in range(N):
            if adj[u, v] and not visited[v]:
                visited[v] = True
                if match_r[v] == -1 or try_kuhn(match_r[v], visited):
                    match_r[v] = u
                    return True
        return False

    matched = 0
    for u in range(N):
        if try_kuhn(u, np.zeros(N, dtype=bool)):
            matched += 1
    return matched == N


def bottleneck_from_cost(cost):
    cost = np.asarray(cost, dtype=np.float64)
    if cost.size == 0:
        return 0.0
    cands = np.unique(cost)
    lo, hi = 0, len(cands) - 1
    while lo < hi:
        mid = (lo + hi) // 2
        if _feasible(cost, cands[mid]):
            hi = mid
        else:
            lo = mid + 1
    return float(cands[lo])


def _assemble_cost(d, pa, pb):
    """Standard Edelsbrunner-Harer augmented matrix from kernel outputs."""
    nn, mm = d.shape
    N = nn + mm
    C = np.zeros((N, N), dtype=np.float64)
    C[:nn, :mm] = d
    C[:nn, mm:] = pa[:, None]             # row-constant: pers(a_i)/2
    C[nn:, :mm] = pb[None, :]             # column-constant: pers(b_j)/2
    # bottom-right diagonal-to-diagonal block stays 0
    return C


def bottleneck_layer_hera(dgm0, dgm1):
    """Forward pass of BottleneckLayerHera (returns a python float)."""
    d, pa, pb, n, m = bottleneck_parts(dgm0, dgm1)
    jax.block_until_ready((d, pa, pb))

    d = np.asarray(d, dtype=np.float64)[:n, :m]
    pa = np.asarray(pa, dtype=np.float64)[:n, 0]
    pb = np.asarray(pb, dtype=np.float64)[0, :m]

    # remove_zero_bars: drop bars with birth == death (exact test, as torch_tda).
    a_np = np.asarray(dgm0, dtype=np.float64)
    b_np = np.asarray(dgm1, dtype=np.float64)
    keep0 = a_np[:, 0] != a_np[:, 1]
    keep1 = b_np[:, 0] != b_np[:, 1]
    d = d[keep0][:, keep1]
    pa = pa[keep0]
    pb = pb[keep1]

    if d.shape[0] + d.shape[1] == 0:
        return 0.0
    return bottleneck_from_cost(_assemble_cost(d, pa, pb))


# ---------------------------------------------------------------------------
# Pure-numpy reference (explicitly removes zero bars, rebuilds the augmented
# matrix with the standard convention, then the same exact matching search).
# ---------------------------------------------------------------------------
def _reference_bottleneck(d0, d1):
    d0 = np.asarray(d0, dtype=np.float64)
    d1 = np.asarray(d1, dtype=np.float64)
    d0 = d0[d0[:, 0] != d0[:, 1]]
    d1 = d1[d1[:, 0] != d1[:, 1]]
    n, m = len(d0), len(d1)
    N = n + m
    if N == 0:
        return 0.0
    C = np.zeros((N, N), dtype=np.float64)
    for i in range(n):
        for j in range(m):
            C[i, j] = max(abs(d0[i, 0] - d1[j, 0]), abs(d0[i, 1] - d1[j, 1]))
        C[i, m:] = (d0[i, 1] - d0[i, 0]) / 2.0        # a_i -> diagonal
    for j in range(m):
        C[n:, j] = (d1[j, 1] - d1[j, 0]) / 2.0        # b_j -> diagonal
    return bottleneck_from_cost(C)


if __name__ == "__main__":
    sys.setrecursionlimit(10000)

    key = jax.random.PRNGKey(0)
    k0, k1, k2, k3 = jax.random.split(key, 4)

    # Test 1: n = m = 8, one zero-length bar in each diagram.
    n, m = 8, 8
    b0 = jax.random.uniform(k0, (n,), dtype=jnp.float32)
    p0 = jax.random.uniform(k1, (n,), dtype=jnp.float32)
    b1 = jax.random.uniform(k2, (m,), dtype=jnp.float32)
    p1 = jax.random.uniform(k3, (m,), dtype=jnp.float32)
    dgm0 = jnp.stack([b0, b0 + p0], axis=1)
    dgm1 = jnp.stack([b1, b1 + p1], axis=1)
    dgm0 = dgm0.at[0].set(jnp.array([0.25, 0.25], jnp.float32))
    dgm1 = dgm1.at[3].set(jnp.array([0.70, 0.70], jnp.float32))

    dist = bottleneck_layer_hera(dgm0, dgm1)
    ref = _reference_bottleneck(np.asarray(dgm0), np.asarray(dgm1))
    assert abs(dist - ref) < 1e-5, (dist, ref)

    # Test 2: asymmetric sizes (exercises padding / slicing), no zero bars.
    dgm0b = dgm0[1:7]                               # (6, 2)
    dgm1b = dgm1[jnp.array([0, 1, 2, 4, 5])]        # (5, 2)
    dist2 = bottleneck_layer_hera(dgm0b, dgm1b)
    ref2 = _reference_bottleneck(np.asarray(dgm0b), np.asarray(dgm1b))
    assert abs(dist2 - ref2) < 1e-5, (dist2, ref2)

    print("KERNEL_OK")
</pallas_src>

<mosaic_0001>
module attributes {stable_mosaic.version = 11 : i64} {
  func.func @_pairwise_linf_kernel(%arg0: i32, %arg1: i32, %arg2: memref<8x2xf32, #tpu.memory_space<vmem>>, %arg3: memref<2x128xf32, #tpu.memory_space<vmem>>, %arg4: memref<8x128xf32, #tpu.memory_space<vmem>>) attributes {dimension_semantics = [#tpu.dimension_semantics<parallel>, #tpu.dimension_semantics<parallel>], iteration_bounds = array<i64: 1, 1>, scalar_prefetch = 0 : i64, scratch_operands = 0 : i64, tpu.core_type = #tpu.core_type<tc>, window_params = [{transform_indices = @transform_0, window_bounds = array<i64: 8, 2>}, {transform_indices = @transform_1, window_bounds = array<i64: 2, 128>}, {transform_indices = @transform_2, window_bounds = array<i64: 8, 128>}]} {
    %c0 = arith.constant 0 : index
    %c0_0 = arith.constant 0 : index
    %0 = vector.load %arg2[%c0, %c0_0] : memref<8x2xf32, #tpu.memory_space<vmem>>, vector<8x2xf32>
    %c0_1 = arith.constant 0 : index
    %c0_2 = arith.constant 0 : index
    %1 = vector.load %arg3[%c0_1, %c0_2] : memref<2x128xf32, #tpu.memory_space<vmem>>, vector<2x128xf32>
    %2 = vector.extract_strided_slice %0 {offsets = [0, 0], sizes = [8, 1], strides = [1, 1]} : vector<8x2xf32> to vector<8x1xf32>
    %3 = vector.extract_strided_slice %0 {offsets = [0, 1], sizes = [8, 1], strides = [1, 1]} : vector<8x2xf32> to vector<8x1xf32>
    %4 = vector.extract_strided_slice %1 {offsets = [0, 0], sizes = [1, 128], strides = [1, 1]} : vector<2x128xf32> to vector<1x128xf32>
    %5 = vector.extract_strided_slice %1 {offsets = [1, 0], sizes = [1, 128], strides = [1, 1]} : vector<2x128xf32> to vector<1x128xf32>
    %6 = vector.broadcast %2 : vector<8x1xf32> to vector<8x128xf32>
    %7 = vector.broadcast %4 : vector<1x128xf32> to vector<8x128xf32>
    %8 = arith.subf %6, %7 : vector<8x128xf32>
    %9 = math.absf %8 : vector<8x128xf32>
    %10 = vector.broadcast %3 : vector<8x1xf32> to vector<8x128xf32>
    %11 = vector.broadcast %5 : vector<1x128xf32> to vector<8x128xf32>
    %12 = arith.subf %10, %11 : vector<8x128xf32>
    %13 = math.absf %12 : vector<8x128xf32>
    %14 = arith.maximumf %9, %13 : vector<8x128xf32>
    %c0_3 = arith.constant 0 : index
    %c0_4 = arith.constant 0 : index
    %15 = vector.load %arg4[%c0_3, %c0_4] : memref<8x128xf32, #tpu.memory_space<vmem>>, vector<8x128xf32>
    tpu.vector_store %arg4[%c0_3, %c0_4], %14 {strides = array<i32>} : memref<8x128xf32, #tpu.memory_space<vmem>>, vector<8x128xf32>,
    return
  }
  func.func @transform_0(%arg0: i32, %arg1: i32) -> (i32, i32) {
    %c0_i32 = arith.constant 0 : i32
    %c0_i32_0 = arith.constant 0 : i32
    return %arg0, %c0_i32 : i32, i32
  }
  func.func @transform_1(%arg0: i32, %arg1: i32) -> (i32, i32) {
    %c0_i32 = arith.constant 0 : i32
    %c0_i32_0 = arith.constant 0 : i32
    return %c0_i32, %arg1 : i32, i32
  }
  func.func @transform_2(%arg0: i32, %arg1: i32) -> (i32, i32) {
    %c0_i32 = arith.constant 0 : i32
    return %arg0, %arg1 : i32, i32
  }
}

</mosaic_0001>

<llo_original>
// kernel: tpu_custom_call.1
$region0: #{tpu_custom_call.1}
  #allocation0 [shape = 'u32[]', space=smem, size = 0x4, offset = 0x4, fixed_abs, tag = 'smem constant byte address 0x4 - core index']
  #allocation1 [shape = 'u32[144,128]{1,0:T(1,128)}', space=vmem, size = 0x12000, scoped, tag = 'internal scratch']
  %s0 = inlined_call_operand.vmem [shape: f32[8,2], index: 0, kind: input, shape index: {}]
  %s1 = inlined_call_operand.vmem [shape: f32[2,128], index: 1, kind: input, shape index: {}]
  %s2 = inlined_call_operand.hbm [shape: f32[8,128], index: 2, kind: output, shape index: {}]
  %s3 = sld [smem:[#allocation0]]
  $region18: #{tpu_custom_call.1} parent=0
    _
  %s5 = ssub.s32 1, %s3
  %s6 = scalar_select 0, %s5, %s3
  $region1: #{tpu_custom_call.1} parent=0
    #allocation2 [shape = 'u8[4096]{0}', space=vmem, size = 0x1000, scoped, tag = 'output window, operand 0, single buffered']
    #allocation3 [shape = 's32[1]{0}', space=sflag, size = 0x4, scoped, tag = 'scoped memory for tpu_custom_call.1']
    %7 = vsyncpa [#allocation3], 0
    // Predicated region
    $region2: #{tpu_custom_call.1} parent=1 // pred_check
      _
    $region3: #{tpu_custom_call.1} parent=1 // pred_check_branch
      %9 = sbr.rel (0) target = $region5
    $region4: #{tpu_custom_call.1} parent=1 // pred_region
      _
    $region5: #{tpu_custom_call.1} parent=1 // pred_fallthru
      _
    // Predicated region
    $region6: #{tpu_custom_call.1} parent=1 // pred_check
      _
    $region7: #{tpu_custom_call.1} parent=1 // pred_check_branch
      %11 = sbr.rel (0) target = $region9
    $region8: #{tpu_custom_call.1} parent=1 // pred_region
      _
    $region9: #{tpu_custom_call.1} parent=1 // pred_fallthru
      _
    %v12 = vld [vmem:[%s0] sm:$0xff]
    %v13 = vld [vmem:[%s1] sm:$0x3]
    %15 = vset.pattern.permute.xlu0 0
    %16 = vperm.xlu0 %15, %v12
    %v17 = vpop.permute.xlu0 %16
    %v19 = vlaneseq
    %v20 = vshrl.u32 %v19, 7
    %v21 = vsub.s32 0, %v20
    %v22 = vrot.slane %v13, %v21
    %v23 = vsub.f32 %v17, %v22
    %v24 = vand.u32 2147483647, %v23
    %25 = vset.pattern.permute.xlu0 1
    %26 = vperm.xlu0 %25, %v12
    %v27 = vpop.permute.xlu0 %26
    %v29 = vlaneseq
    %v30 = vshrl.u32 %v29, 7
    %v31 = vsub.s32 1, %v30
    %v32 = vrot.slane %v13, %v31
    %v33 = vsub.f32 %v27, %v32
    %v34 = vand.u32 2147483647, %v33
    %v35 = vmax.f32 %v24, %v34
    %36 = vst [vmem:[#allocation2] sm:$0xff] %v35
    // Predicated region
    $region10: #{tpu_custom_call.1} parent=1 // pred_check
      _
    $region11: #{tpu_custom_call.1} parent=1 // pred_check_branch
      %38 = sbr.rel (0) target = $region13
    $region12: #{tpu_custom_call.1} parent=1 // pred_region
      %s40 = ssub.s32 128, 128
      %41 = vsyncadd [#allocation3], %s40
      %s43 = sshll.u32 [#allocation2], 4
      %s44 = int_to_ptr.vmem [resolvable:$true] %s43
      %46 = dma.vmem_to_hbm [thread:$0]  %s44, 128, %s2, [#allocation3]
    $region13: #{tpu_custom_call.1} parent=1 // pred_fallthru
      _
    // Predicated region
    $region14: #{tpu_custom_call.1} parent=1 // pred_check
      _
    $region15: #{tpu_custom_call.1} parent=1 // pred_check_branch
      %48 = sbr.rel (0) target = $region17
    $region16: #{tpu_custom_call.1} parent=1 // pred_region
      %49 = dma.done [#allocation3], 128
    $region17: #{tpu_custom_call.1} parent=1 // pred_fallthru
      _
    %50 = vsyncpa [#allocation3], 1

</llo_original>
